<compile_context>
chip_gen: v5e
topology: v5e:2x2
jax: 0.10.0
libtpu: 0.0.40
codegen_flags: <defaults>
</compile_context>

<pallas_src>
import functools

import jax
import jax.numpy as jnp
import numpy as np
from jax.experimental import pallas as pl
from jax.experimental.pallas import tpu as pltpu

_SQRT2 = float(2.0 ** 0.5)  # fused_leaky_relu default scale (folded into MDw)


# ---------------------------------------------------------------------------
# Pallas kernel: one (CB, H, W) channel block per grid step.
# ---------------------------------------------------------------------------
def _alias_free_kernel(x_ref, b_ref, muw_t_ref, muh_t_ref, mdh_t_ref, mdw_t_ref,
                       o_ref, *, negative_slope):
    cb, h, w = x_ref.shape
    wu = muw_t_ref.shape[1]
    hu = muh_t_ref.shape[1]
    hdc = mdh_t_ref.shape[1]
    wdc = mdw_t_ref.shape[1]

    # per-channel bias add in f32, then bf16 for the MXU (f32 accumulation).
    x = (x_ref[...].astype(jnp.float32) + b_ref[...]).astype(jnp.bfloat16)

    # --- upsample FIR along W: one (CB*H, W) @ (W, Wu) matmul ----------------
    y = jnp.dot(x.reshape(cb * h, w), muw_t_ref[...],
                preferred_element_type=jnp.float32)               # (CB*H, Wu)
    # bring H to the contraction (last) position: (CB, Wu, H)
    y = jnp.swapaxes(y.reshape(cb, h, wu), 1, 2).astype(jnp.bfloat16)

    # --- upsample FIR along H: one (CB*Wu, H) @ (H, Hu) matmul ---------------
    y = jnp.dot(y.reshape(cb * wu, h), muh_t_ref[...],
                preferred_element_type=jnp.float32)               # (CB*Wu, Hu)

    # fused_leaky_relu (the sqrt(2) gain rides inside the W-downsample matrix)
    y = jnp.where(y >= 0, y, y * negative_slope).astype(jnp.bfloat16)

    # --- downsample FIR along H (decimation + margin crop folded) ------------
    z = jnp.dot(y, mdh_t_ref[...],
                preferred_element_type=jnp.float32)               # (CB*Wu, Hdc)
    # bring Wu back to the contraction position: (CB, Hdc, Wu)
    z = jnp.swapaxes(z.reshape(cb, wu, hdc), 1, 2).astype(jnp.bfloat16)

    # --- downsample FIR along W (decimation + crop + sqrt(2) folded) ---------
    z = jnp.dot(z.reshape(cb * hdc, wu), mdw_t_ref[...],
                preferred_element_type=jnp.float32)               # (CB*Hdc, Wdc)

    o_ref[...] = z.reshape(cb, hdc, wdc).astype(o_ref.dtype)


# ---------------------------------------------------------------------------
# Parameter setup (plain JAX glue): dense 1D upfirdn operator matrices.
# ---------------------------------------------------------------------------
def _upfirdn1d_matrix(kernel, n_in, up, down, pad):
    """M (n_out, n_in) with M @ x == upfirdn1d(x, kernel, up, down, pad)."""
    p0, p1 = pad
    k = kernel.shape[0]
    total = n_in * up + p0 + p1
    n_out = (total - k) // down + 1
    m = jnp.arange(n_out)[:, None]
    i = jnp.arange(n_in)[None, :]
    t = p0 + i * up - m * down
    valid = (t >= 0) & (t < k)
    tc = jnp.clip(t, 0, k - 1)
    flipped = jnp.flip(kernel)
    return jnp.where(valid, flipped[tc], 0.0).astype(jnp.float32)


# ---------------------------------------------------------------------------
# Wrapper == AliasFreeActivation.forward
# ---------------------------------------------------------------------------
def alias_free_activation(x, bias, upsample_filter, downsample_filter, *,
                          upsample, downsample, margin, negative_slope,
                          max_channel_block=None, vmem_budget_bytes=None):
    N, C, H, W = x.shape

    # buffer scaling from __init__: upsample_filter * upsample
    up_f = (upsample_filter * upsample).astype(jnp.float32)
    down_f = downsample_filter.astype(jnp.float32)

    p = upsample_filter.shape[0] - upsample
    up_pad = ((p + 1) // 2 + upsample - 1, p // 2)
    p = downsample_filter.shape[0] - downsample
    down_pad = ((p + 1) // 2, p // 2)

    muw = _upfirdn1d_matrix(up_f, W, upsample, 1, up_pad)         # (Wu, W)
    muh = _upfirdn1d_matrix(up_f, H, upsample, 1, up_pad)         # (Hu, H)
    wu, hu = muw.shape[0], muh.shape[0]
    mdw = _upfirdn1d_matrix(down_f, wu, 1, downsample, down_pad)  # (Wd, Wu)
    mdh = _upfirdn1d_matrix(down_f, hu, 1, downsample, down_pad)  # (Hd, Hu)
    wd, hd = mdw.shape[0], mdh.shape[0]

    # Fold the margin crop into the downsample matrices (no post-kernel slice).
    m = (margin * upsample - margin * downsample) // 2
    assert m >= 0 and hd - 2 * m > 0 and wd - 2 * m > 0, "invalid margin crop"
    if m > 0:
        mdw = mdw[m:wd - m]
        mdh = mdh[m:hd - m]
    wdc, hdc = mdw.shape[0], mdh.shape[0]

    # Fold the fused_leaky_relu sqrt(2) gain into the W-downsample matrix.
    mdw = mdw * _SQRT2

    # bf16 operator matrices, transposed so the activation is always the LHS
    # (MXU accumulates in f32).  All plain 2D — no per-channel broadcast.
    muw_t = muw.T.astype(jnp.bfloat16)                            # (W,  Wu)
    muh_t = muh.T.astype(jnp.bfloat16)                            # (H,  Hu)
    mdh_t = mdh.T.astype(jnp.bfloat16)                            # (Hu, Hdc)
    mdw_t = mdw.T.astype(jnp.bfloat16)                            # (Wu, Wdc)

    in_bytes = jnp.dtype(x.dtype).itemsize
    out_bytes = in_bytes
    fir_bytes = 2 * (W * wu + H * hu + hu * hdc + wu * wdc)       # bf16 coeffs

    # Generation-aware VMEM budget (v5e/v6e: 128 MiB, v7x: 64 MiB per TC).
    try:
        vmem_cap = int(pltpu.get_tpu_info().vmem_capacity_bytes)
    except Exception:
        vmem_cap = 64 * 1024 * 1024          # conservative (v7x per-TC size)
    if vmem_budget_bytes is None:
        vmem_budget_bytes = (vmem_cap * 5) // 8    # 80 MiB @128, 40 MiB @64
    vmem_limit_bytes = (vmem_cap * 3) // 4         # 96 MiB @128, 48 MiB @64

    def _vmem_estimate(cb):
        est = 2 * cb * H * W * in_bytes            # x block, double-buffered
        est += 2 * cb * hdc * wdc * out_bytes      # out block, double-buffered
        est += 2 * fir_bytes                       # FIR matrices (2 bufs each)
        # kernel-internal intermediates (conservative: sum of per-stage tensors)
        est += cb * H * W * 2                      # bf16 biased x
        est += cb * H * wu * (4 + 2)               # f32 W-up out + bf16 transpose
        est += cb * wu * hu * (4 + 2)              # f32 H-up out + bf16 lrelu
        est += cb * wu * hdc * (4 + 2)             # f32 H-down out + bf16 transpose
        est += cb * hdc * wdc * 4                  # f32 W-down out
        est += 2 * 1024 * 1024                     # Mosaic internal scratch margin
        return est

    divisors = [d for d in range(1, C + 1) if C % d == 0]
    if max_channel_block is not None:
        divisors = [d for d in divisors if d <= max_channel_block] or [1]
    feasible = [d for d in divisors if _vmem_estimate(d) <= vmem_budget_bytes]
    if not feasible:
        feasible = [divisors[0]]                   # cb=1 fallback
    # keep >= 2 grid steps when possible (v7x shards parallel axes over 2 TCs)
    two_plus = [d for d in feasible if N * (C // d) >= 2]
    cb = max(two_plus) if two_plus else max(feasible)

    bias3 = bias.reshape(C, 1, 1).astype(jnp.float32)

    kernel = functools.partial(_alias_free_kernel,
                               negative_slope=float(negative_slope))
    # Output keeps the input dtype (module semantics); pass bf16 x for bf16
    # in/out and half the HBM traffic.
    out = pl.pallas_call(
        kernel,
        out_shape=jax.ShapeDtypeStruct((N, C, hdc, wdc), x.dtype),
        grid_spec=pltpu.PrefetchScalarGridSpec(
            num_scalar_prefetch=0,
            grid=(N, C // cb),
            in_specs=[
                pl.BlockSpec((None, cb, H, W), lambda n, c: (n, c, 0, 0)),
                pl.BlockSpec((cb, 1, 1), lambda n, c: (c, 0, 0)),
                pl.BlockSpec((W, wu), lambda n, c: (0, 0)),          # MUw^T
                pl.BlockSpec((H, hu), lambda n, c: (0, 0)),          # MUh^T
                pl.BlockSpec((hu, hdc), lambda n, c: (0, 0)),        # MDh^T (crop)
                pl.BlockSpec((wu, wdc), lambda n, c: (0, 0)),        # MDw^T (crop+√2)
            ],
            out_specs=pl.BlockSpec((None, cb, hdc, wdc),
                                   lambda n, c: (n, c, 0, 0)),
        ),
        compiler_params=pltpu.CompilerParams(
            dimension_semantics=("parallel", "parallel"),
            vmem_limit_bytes=int(vmem_limit_bytes)),
    )(x, bias3, muw_t, muh_t, mdh_t, mdw_t)

    return out


# ---------------------------------------------------------------------------
# Pure-JAX reference (direct upfirdn semantics) for validation.
# ---------------------------------------------------------------------------
def _upfirdn1d_ref(x, kernel, up, down, pad, axis):
    x = jnp.moveaxis(x, axis, -1)
    n = x.shape[-1]
    up_arr = jnp.zeros(x.shape[:-1] + (n * up,), jnp.float32)
    up_arr = up_arr.at[..., ::up].set(x)
    up_arr = jnp.pad(up_arr, [(0, 0)] * (x.ndim - 1) + [(pad[0], pad[1])])
    k = kernel.shape[0]
    w = jnp.flip(kernel)
    total = up_arr.shape[-1]
    n_out = (total - k) // down + 1
    idx = jnp.arange(n_out) * down
    out = jnp.zeros(x.shape[:-1] + (n_out,), jnp.float32)
    for t in range(k):
        out = out + w[t] * up_arr[..., idx + t]
    return jnp.moveaxis(out, -1, axis)


def _reference_forward(x, bias, upsample_filter, downsample_filter, *,
                       upsample, downsample, margin, negative_slope):
    up_f = upsample_filter * upsample
    p = upsample_filter.shape[0] - upsample
    up_pad = ((p + 1) // 2 + upsample - 1, p // 2)
    p = downsample_filter.shape[0] - downsample
    down_pad = ((p + 1) // 2, p // 2)

    out = x + bias.reshape(1, -1, 1, 1)
    out = _upfirdn1d_ref(out, up_f, upsample, 1, up_pad, axis=3)      # W
    out = _upfirdn1d_ref(out, up_f, upsample, 1, up_pad, axis=2)      # H
    out = jnp.where(out >= 0, out, out * negative_slope) * _SQRT2
    out = _upfirdn1d_ref(out, downsample_filter, 1, downsample, down_pad, axis=3)
    out = _upfirdn1d_ref(out, downsample_filter, 1, downsample, down_pad, axis=2)
    m = (margin * upsample - margin * downsample) // 2
    if m > 0:
        out = out[:, :, m:-m, m:-m]
    return out


if __name__ == "__main__":
    key = jax.random.PRNGKey(0)
    kx, kb = jax.random.split(key)

    # Asymmetric H/W to exercise the in-kernel transposes.
    N, C, H, W = 2, 4, 16, 24
    up_factor, down_factor, margin = 2, 2, 4
    negative_slope = 0.2

    x = jax.random.normal(kx, (N, C, H, W), jnp.float32)
    bias = 0.1 * jax.random.normal(kb, (C,), jnp.float32)

    # deterministic symmetric low-pass filters (constructor buffers)
    up_filter = jnp.array([1.0, 3.0, 5.0, 5.0, 3.0, 1.0], jnp.float32)
    up_filter = up_filter / up_filter.sum()
    down_filter = jnp.array([1.0, 2.0, 3.0, 3.0, 2.0, 1.0], jnp.float32)
    down_filter = down_filter / down_filter.sum()

    out = alias_free_activation(
        x, bias, up_filter, down_filter,
        upsample=up_factor, downsample=down_factor,
        margin=margin, negative_slope=negative_slope)
    out = jax.block_until_ready(out)

    ref = _reference_forward(
        x, bias, up_filter, down_filter,
        upsample=up_factor, downsample=down_factor,
        margin=margin, negative_slope=negative_slope)

    # bf16 matmul inputs (f32 accumulation) vs pure-f32 reference.
    np.testing.assert_allclose(np.asarray(out), np.asarray(ref),
                               rtol=5e-2, atol=5e-2)
    print("KERNEL_OK")
</pallas_src>

<mosaic_0001>
module attributes {stable_mosaic.version = 11 : i64} {
  func.func @_alias_free_kernel(%arg0: i32, %arg1: i32, %arg2: memref<1x4x16x24xf32, #tpu.memory_space<vmem>>, %arg3: memref<4x1x1xf32, #tpu.memory_space<vmem>>, %arg4: memref<24x48xbf16, #tpu.memory_space<vmem>>, %arg5: memref<16x32xbf16, #tpu.memory_space<vmem>>, %arg6: memref<32x16xbf16, #tpu.memory_space<vmem>>, %arg7: memref<48x24xbf16, #tpu.memory_space<vmem>>, %arg8: memref<1x4x16x24xf32, #tpu.memory_space<vmem>>) attributes {dimension_semantics = [#tpu.dimension_semantics<parallel>, #tpu.dimension_semantics<parallel>], iteration_bounds = array<i64: 2, 1>, scalar_prefetch = 0 : i64, scratch_operands = 0 : i64, tpu.core_type = #tpu.core_type<tc>, window_params = [{transform_indices = @transform_0, window_bounds = array<i64: 1, 4, 16, 24>}, {transform_indices = @transform_1, window_bounds = array<i64: 4, 1, 1>}, {pipeline_mode = #tpu.pipeline_mode<synchronous>, transform_indices = @transform_2, window_bounds = array<i64: 24, 48>}, {pipeline_mode = #tpu.pipeline_mode<synchronous>, transform_indices = @transform_3, window_bounds = array<i64: 16, 32>}, {pipeline_mode = #tpu.pipeline_mode<synchronous>, transform_indices = @transform_4, window_bounds = array<i64: 32, 16>}, {pipeline_mode = #tpu.pipeline_mode<synchronous>, transform_indices = @transform_5, window_bounds = array<i64: 48, 24>}, {transform_indices = @transform_6, window_bounds = array<i64: 1, 4, 16, 24>}]} {
    %c0 = arith.constant 0 : index
    %c0_0 = arith.constant 0 : index
    %c0_1 = arith.constant 0 : index
    %c0_2 = arith.constant 0 : index
    %0 = vector.load %arg2[%c0, %c0_0, %c0_1, %c0_2] : memref<1x4x16x24xf32, #tpu.memory_space<vmem>>, vector<1x4x16x24xf32>
    %1 = vector.shape_cast %0 : vector<1x4x16x24xf32> to vector<4x16x24xf32>
    %c0_3 = arith.constant 0 : index
    %c0_4 = arith.constant 0 : index
    %c0_5 = arith.constant 0 : index
    %2 = vector.load %arg3[%c0_3, %c0_4, %c0_5] : memref<4x1x1xf32, #tpu.memory_space<vmem>>, vector<4x1x1xf32>
    %3 = vector.broadcast %2 : vector<4x1x1xf32> to vector<4x16x24xf32>
    %4 = arith.addf %1, %3 : vector<4x16x24xf32>
    %5 = arith.truncf %4 : vector<4x16x24xf32> to vector<4x16x24xbf16>
    %6 = vector.shape_cast %5 : vector<4x16x24xbf16> to vector<64x24xbf16>
    %c0_6 = arith.constant 0 : index
    %c0_7 = arith.constant 0 : index
    %7 = vector.load %arg4[%c0_6, %c0_7] : memref<24x48xbf16, #tpu.memory_space<vmem>>, vector<24x48xbf16>
    %cst = arith.constant dense<0.000000e+00> : vector<64x48xf32>
    %8 = tpu.matmul %6, %7, %cst {dimension_numbers = #tpu.dot_dimension_numbers<[1], [0], [0], [1], [0, 0, 1, 1], [], []>} : vector<64x24xbf16>, vector<24x48xbf16>, vector<64x48xf32> -> vector<64x48xf32>
    %9 = vector.shape_cast %8 : vector<64x48xf32> to vector<4x16x48xf32>
    %10 = tpu.transpose %9, [0, 2, 1] : vector<4x16x48xf32> -> vector<4x48x16xf32>
    %11 = arith.truncf %10 : vector<4x48x16xf32> to vector<4x48x16xbf16>
    %12 = vector.shape_cast %11 : vector<4x48x16xbf16> to vector<192x16xbf16>
    %c0_8 = arith.constant 0 : index
    %c0_9 = arith.constant 0 : index
    %13 = vector.load %arg5[%c0_8, %c0_9] : memref<16x32xbf16, #tpu.memory_space<vmem>>, vector<16x32xbf16>
    %cst_10 = arith.constant dense<0.000000e+00> : vector<192x32xf32>
    %14 = tpu.matmul %12, %13, %cst_10 {dimension_numbers = #tpu.dot_dimension_numbers<[1], [0], [0], [1], [0, 0, 1, 1], [], []>} : vector<192x16xbf16>, vector<16x32xbf16>, vector<192x32xf32> -> vector<192x32xf32>
    %cst_11 = arith.constant 0.000000e+00 : f32
    %15 = vector.broadcast %cst_11 : f32 to vector<192x32xf32>
    %16 = arith.cmpf oge, %14, %15 : vector<192x32xf32>
    %cst_12 = arith.constant 2.000000e-01 : f32
    %17 = vector.broadcast %cst_12 : f32 to vector<192x32xf32>
    %18 = arith.mulf %14, %17 : vector<192x32xf32>
    %19 = arith.select %16, %14, %18 : vector<192x32xi1>, vector<192x32xf32>
    %20 = arith.truncf %19 : vector<192x32xf32> to vector<192x32xbf16>
    %c0_13 = arith.constant 0 : index
    %c0_14 = arith.constant 0 : index
    %21 = vector.load %arg6[%c0_13, %c0_14] : memref<32x16xbf16, #tpu.memory_space<vmem>>, vector<32x16xbf16>
    %cst_15 = arith.constant dense<0.000000e+00> : vector<192x16xf32>
    %22 = tpu.matmul %20, %21, %cst_15 {dimension_numbers = #tpu.dot_dimension_numbers<[1], [0], [0], [1], [0, 0, 1, 1], [], []>} : vector<192x32xbf16>, vector<32x16xbf16>, vector<192x16xf32> -> vector<192x16xf32>
    %23 = vector.shape_cast %22 : vector<192x16xf32> to vector<4x48x16xf32>
    %24 = tpu.transpose %23, [0, 2, 1] : vector<4x48x16xf32> -> vector<4x16x48xf32>
    %25 = arith.truncf %24 : vector<4x16x48xf32> to vector<4x16x48xbf16>
    %26 = vector.shape_cast %25 : vector<4x16x48xbf16> to vector<64x48xbf16>
    %c0_16 = arith.constant 0 : index
    %c0_17 = arith.constant 0 : index
    %27 = vector.load %arg7[%c0_16, %c0_17] : memref<48x24xbf16, #tpu.memory_space<vmem>>, vector<48x24xbf16>
    %cst_18 = arith.constant dense<0.000000e+00> : vector<64x24xf32>
    %28 = tpu.matmul %26, %27, %cst_18 {dimension_numbers = #tpu.dot_dimension_numbers<[1], [0], [0], [1], [0, 0, 1, 1], [], []>} : vector<64x48xbf16>, vector<48x24xbf16>, vector<64x24xf32> -> vector<64x24xf32>
    %29 = vector.shape_cast %28 : vector<64x24xf32> to vector<4x16x24xf32>
    %c0_19 = arith.constant 0 : index
    %c0_20 = arith.constant 0 : index
    %c0_21 = arith.constant 0 : index
    %c0_22 = arith.constant 0 : index
    %30 = vector.load %arg8[%c0_19, %c0_20, %c0_21, %c0_22] : memref<1x4x16x24xf32, #tpu.memory_space<vmem>>, vector<1x4x16x24xf32>
    %31 = vector.shape_cast %30 : vector<1x4x16x24xf32> to vector<4x16x24xf32>
    %32 = vector.shape_cast %29 : vector<4x16x24xf32> to vector<1x4x16x24xf32>
    tpu.vector_store %arg8[%c0_19, %c0_20, %c0_21, %c0_22], %32 {strides = array<i32>} : memref<1x4x16x24xf32, #tpu.memory_space<vmem>>, vector<1x4x16x24xf32>,
    return
  }
  func.func @transform_0(%arg0: i32, %arg1: i32) -> (i32, i32, i32, i32) {
    %c0_i32 = arith.constant 0 : i32
    %c0_i32_0 = arith.constant 0 : i32
    %c0_i32_1 = arith.constant 0 : i32
    return %arg0, %arg1, %c0_i32, %c0_i32_0 : i32, i32, i32, i32
  }
  func.func @transform_1(%arg0: i32, %arg1: i32) -> (i32, i32, i32) {
    %c0_i32 = arith.constant 0 : i32
    %c0_i32_0 = arith.constant 0 : i32
    %c0_i32_1 = arith.constant 0 : i32
    return %arg1, %c0_i32, %c0_i32_0 : i32, i32, i32
  }
  func.func @transform_2(%arg0: i32, %arg1: i32) -> (i32, i32) {
    %c0_i32 = arith.constant 0 : i32
    %c0_i32_0 = arith.constant 0 : i32
    %c0_i32_1 = arith.constant 0 : i32
    return %c0_i32, %c0_i32_0 : i32, i32
  }
  func.func @transform_3(%arg0: i32, %arg1: i32) -> (i32, i32) {
    %c0_i32 = arith.constant 0 : i32
    %c0_i32_0 = arith.constant 0 : i32
    %c0_i32_1 = arith.constant 0 : i32
    return %c0_i32, %c0_i32_0 : i32, i32
  }
  func.func @transform_4(%arg0: i32, %arg1: i32) -> (i32, i32) {
    %c0_i32 = arith.constant 0 : i32
    %c0_i32_0 = arith.constant 0 : i32
    %c0_i32_1 = arith.constant 0 : i32
    return %c0_i32, %c0_i32_0 : i32, i32
  }
  func.func @transform_5(%arg0: i32, %arg1: i32) -> (i32, i32) {
    %c0_i32 = arith.constant 0 : i32
    %c0_i32_0 = arith.constant 0 : i32
    %c0_i32_1 = arith.constant 0 : i32
    return %c0_i32, %c0_i32_0 : i32, i32
  }
  func.func @transform_6(%arg0: i32, %arg1: i32) -> (i32, i32, i32, i32) {
    %c0_i32 = arith.constant 0 : i32
    %c0_i32_0 = arith.constant 0 : i32
    %c0_i32_1 = arith.constant 0 : i32
    return %arg0, %arg1, %c0_i32, %c0_i32_0 : i32, i32, i32, i32
  }
}

</mosaic_0001>

<llo_original>
// kernel: tpu_custom_call.1
$region0: #{tpu_custom_call.1}
  #allocation0 [shape = 'u32[]', space=smem, size = 0x4, offset = 0x4, fixed_abs, tag = 'smem constant byte address 0x4 - core index']
  #allocation1 [shape = 'u32[72,128]{1,0:T(1,128)}', space=vmem, size = 0x9000, scoped, tag = 'internal scratch']
  %s0 = inlined_call_operand.hbm [shape: f32[2,4,16,24], index: 0, kind: input, shape index: {}]
  %s1 = inlined_call_operand.vmem [shape: f32[4,1,1], index: 1, kind: input, shape index: {}]
  %s2 = inlined_call_operand.vmem [shape: bf16[24,48], index: 2, kind: input, shape index: {}]
  %s3 = inlined_call_operand.vmem [shape: bf16[16,32], index: 3, kind: input, shape index: {}]
  %s4 = inlined_call_operand.vmem [shape: bf16[32,16], index: 4, kind: input, shape index: {}]
  %s5 = inlined_call_operand.vmem [shape: bf16[48,24], index: 5, kind: input, shape index: {}]
  %s6 = inlined_call_operand.hbm [shape: f32[2,4,16,24], index: 6, kind: output, shape index: {}]
  %s7 = sld [smem:[#allocation0]]
  $region61: #{tpu_custom_call.1} parent=0
    _
  %s9 = ssub.s32 1, %s7
  %s10 = scalar_select 0, %s9, %s7
  $region1: #{tpu_custom_call.1} parent=0
    #allocation2 [shape = 'u8[65536]{0}', space=vmem, size = 0x10000, scoped, tag = 'input window, operand 0']
    #allocation3 [shape = 's32[2]{0}', space=sflag, size = 0x8, scoped, tag = 'scoped memory for tpu_custom_call.1']
    #allocation4 [shape = 's32[2]{0}', space=sflag, size = 0x8, scoped, tag = 'scoped memory for tpu_custom_call.1']
    #allocation5 [shape = 'u8[65536]{0}', space=vmem, size = 0x10000, scoped, tag = 'output window, operand 0']
    %11 = vsyncpa [#allocation3], 0
    %s12 = scalar_lea.sflag [#allocation3], 1
    %13 = vsyncpa %s12, 0
    %14 = vsyncpa [#allocation4], 0
    %s15 = scalar_lea.sflag [#allocation4], 1
    %16 = vsyncpa %s15, 0
    loop: start=0, step=1, limit=4
    $region2: #{tpu_custom_call.1} parent=1 // loop_pre_header
      _
    $region3: #{tpu_custom_call.1} parent=1 // loop_header
      %s18 = sphi 0, %s22
      %p19 = scmp.ge.s32.totalorder %s18, 4
      %s25 = sphi 0, %s37
      %s26 = sphi 0, %s33
      %s27 = sphi 0, %s25
      %s28 = sphi 0, %s26
      %s29 = sphi 0, %s27
      %s30 = sphi 0, %s28
      %s42 = sphi 0, %s44
      %s45 = sphi 0, %s42
      %s46 = sphi 0, %s45
      %s62 = sphi 0, %s46
      %s68 = sphi 0, %s70
      %s71 = sphi 0, %s68
      %s72 = sphi 0, %s71
      %s88 = sphi 0, %s72
      %s92 = sphi 0, %s92
      %s94 = sphi 0, %s92
      %s95 = sphi 0, %s94
      %s109 = sphi 0, %s95
      %s113 = sphi 0, %s113
      %s115 = sphi 0, %s113
      %s116 = sphi 0, %s115
      %s130 = sphi 0, %s116
      %s134 = sphi 0, %s134
      %s136 = sphi 0, %s134
      %s137 = sphi 0, %s136
      %s151 = sphi 0, %s137
      %s155 = sphi 0, %s155
      %s157 = sphi 0, %s155
      %s158 = sphi 0, %s157
      %s172 = sphi 0, %s158
      %s180 = sphi 0, %s182
      %s183 = sphi 0, %s180
      %s184 = sphi 0, %s183
      %s200 = sphi 0, %s184
    $region4: #{tpu_custom_call.1} parent=1 // loop_header_branch
      %21 = sbr.rel (%p19) target = $region8
    $region5: #{tpu_custom_call.1} parent=1 // loop_body
      %s23 = ssub.s32 %s18, 1
      %s24 = ssub.s32 %s18, 2
      %s31 = sadd.s32 1, %s26
      %p32 = scmp.ge.s32.totalorder %s31, 1
      %s33 = scalar_select %p32, 0, %s31
      %s34 = sadd.s32 1, %s25
      %s35 = scalar_select %p32, %s34, %s25
      %p36 = scmp.ge.s32.totalorder %s35, 2
      %s37 = scalar_select %p36, 0, %s35
      %s38 = ssub.s32 %s25, %s37
      %s39 = ssub.s32 %s26, %s33
      %s40 = sor.u32 %s38, %s39
      %p41 = scmp.eq.s32.totalorder %s40, 0
      %s43 = sadd.s32 %s42, 1
      %s44 = scalar_select %p41, %s42, %s43
      %p47 = pneg %p41
      %p48 = scmp.eq.s32.totalorder %s18, 1
      %p49 = por %p47, %p48
      %p50 = scmp.ne.s32.totalorder %s42, %s45
      %p51 = scmp.eq.s32.totalorder %s18, 0
      %p52 = por %p50, %p51
      %p53 = scmp.ne.s32.totalorder %s42, %s45
      %p54 = scmp.eq.s32.totalorder %s23, 1
      %p55 = por %p53, %p54
      %p56 = scmp.ne.s32.totalorder %s45, %s46
      %p57 = scmp.eq.s32.totalorder %s23, 0
      %p58 = por %p56, %p57
      %p59 = scmp.ne.s32.totalorder %s45, %s46
      %p60 = scmp.eq.s32.totalorder %s24, 1
      %p61 = por %p59, %p60
      %p63 = scmp.ne.s32.totalorder %s46, %s62
      %p64 = scmp.eq.s32.totalorder %s24, 0
      %p65 = por %p63, %p64
      %s66 = ssub.s32 %s26, %s33
      %p67 = scmp.eq.s32.totalorder %s66, 0
      %s69 = sadd.s32 %s68, 1
      %s70 = scalar_select %p67, %s68, %s69
      %p73 = pneg %p67
      %p74 = scmp.eq.s32.totalorder %s18, 1
      %p75 = por %p73, %p74
      %p76 = scmp.ne.s32.totalorder %s68, %s71
      %p77 = scmp.eq.s32.totalorder %s18, 0
      %p78 = por %p76, %p77
      %p79 = scmp.ne.s32.totalorder %s68, %s71
      %p80 = scmp.eq.s32.totalorder %s23, 1
      %p81 = por %p79, %p80
      %p82 = scmp.ne.s32.totalorder %s71, %s72
      %p83 = scmp.eq.s32.totalorder %s23, 0
      %p84 = por %p82, %p83
      %p85 = scmp.ne.s32.totalorder %s71, %s72
      %p86 = scmp.eq.s32.totalorder %s24, 1
      %p87 = por %p85, %p86
      %p89 = scmp.ne.s32.totalorder %s72, %s88
      %p90 = scmp.eq.s32.totalorder %s24, 0
      %p91 = por %p89, %p90
      %s93 = sadd.s32 %s92, 1
      %p96 = scmp.eq.s32.totalorder %s18, 1
      %p97 = scmp.ne.s32.totalorder %s92, %s94
      %p98 = scmp.eq.s32.totalorder %s18, 0
      %p99 = por %p97, %p98
      %p100 = scmp.ne.s32.totalorder %s92, %s94
      %p101 = scmp.eq.s32.totalorder %s23, 1
      %p102 = por %p100, %p101
      %p103 = scmp.ne.s32.totalorder %s94, %s95
      %p104 = scmp.eq.s32.totalorder %s23, 0
      %p105 = por %p103, %p104
      %p106 = scmp.ne.s32.totalorder %s94, %s95
      %p107 = scmp.eq.s32.totalorder %s24, 1
      %p108 = por %p106, %p107
      %p110 = scmp.ne.s32.totalorder %s95, %s109
      %p111 = scmp.eq.s32.totalorder %s24, 0
      %p112 = por %p110, %p111
      %s114 = sadd.s32 %s113, 1
      %p117 = scmp.eq.s32.totalorder %s18, 1
      %p118 = scmp.ne.s32.totalorder %s113, %s115
      %p119 = scmp.eq.s32.totalorder %s18, 0
      %p120 = por %p118, %p119
      %p121 = scmp.ne.s32.totalorder %s113, %s115
      %p122 = scmp.eq.s32.totalorder %s23, 1
      %p123 = por %p121, %p122
      %p124 = scmp.ne.s32.totalorder %s115, %s116
      %p125 = scmp.eq.s32.totalorder %s23, 0
      %p126 = por %p124, %p125
      %p127 = scmp.ne.s32.totalorder %s115, %s116
      %p128 = scmp.eq.s32.totalorder %s24, 1
      %p129 = por %p127, %p128
      %p131 = scmp.ne.s32.totalorder %s116, %s130
      %p132 = scmp.eq.s32.totalorder %s24, 0
      %p133 = por %p131, %p132
      %s135 = sadd.s32 %s134, 1
      %p138 = scmp.eq.s32.totalorder %s18, 1
      %p139 = scmp.ne.s32.totalorder %s134, %s136
      %p140 = scmp.eq.s32.totalorder %s18, 0
      %p141 = por %p139, %p140
      %p142 = scmp.ne.s32.totalorder %s134, %s136
      %p143 = scmp.eq.s32.totalorder %s23, 1
      %p144 = por %p142, %p143
      %p145 = scmp.ne.s32.totalorder %s136, %s137
      %p146 = scmp.eq.s32.totalorder %s23, 0
      %p147 = por %p145, %p146
      %p148 = scmp.ne.s32.totalorder %s136, %s137
      %p149 = scmp.eq.s32.totalorder %s24, 1
      %p150 = por %p148, %p149
      %p152 = scmp.ne.s32.totalorder %s137, %s151
      %p153 = scmp.eq.s32.totalorder %s24, 0
      %p154 = por %p152, %p153
      %s156 = sadd.s32 %s155, 1
      %p159 = scmp.eq.s32.totalorder %s18, 1
      %p160 = scmp.ne.s32.totalorder %s155, %s157
      %p161 = scmp.eq.s32.totalorder %s18, 0
      %p162 = por %p160, %p161
      %p163 = scmp.ne.s32.totalorder %s155, %s157
      %p164 = scmp.eq.s32.totalorder %s23, 1
      %p165 = por %p163, %p164
      %p166 = scmp.ne.s32.totalorder %s157, %s158
      %p167 = scmp.eq.s32.totalorder %s23, 0
      %p168 = por %p166, %p167
      %p169 = scmp.ne.s32.totalorder %s157, %s158
      %p170 = scmp.eq.s32.totalorder %s24, 1
      %p171 = por %p169, %p170
      %p173 = scmp.ne.s32.totalorder %s158, %s172
      %p174 = scmp.eq.s32.totalorder %s24, 0
      %p175 = por %p173, %p174
      %s176 = ssub.s32 %s25, %s37
      %s177 = ssub.s32 %s26, %s33
      %s178 = sor.u32 %s176, %s177
      %p179 = scmp.eq.s32.totalorder %s178, 0
      %s181 = sadd.s32 %s180, 1
      %s182 = scalar_select %p179, %s180, %s181
      %p185 = pneg %p179
      %p186 = scmp.eq.s32.totalorder %s18, 1
      %p187 = por %p185, %p186
      %p188 = scmp.ne.s32.totalorder %s180, %s183
      %p189 = scmp.eq.s32.totalorder %s18, 0
      %p190 = por %p188, %p189
      %p191 = scmp.ne.s32.totalorder %s180, %s183
      %p192 = scmp.eq.s32.totalorder %s23, 1
      %p193 = por %p191, %p192
      %p194 = scmp.ne.s32.totalorder %s183, %s184
      %p195 = scmp.eq.s32.totalorder %s23, 0
      %p196 = por %p194, %p195
      %p197 = scmp.ne.s32.totalorder %s183, %s184
      %p198 = scmp.eq.s32.totalorder %s24, 1
      %p199 = por %p197, %p198
      %p201 = scmp.ne.s32.totalorder %s184, %s200
      %p202 = scmp.eq.s32.totalorder %s24, 0
      %p203 = por %p201, %p202
      %p204 = scmp.le.s32.totalorder 1, %s18
      %p205 = scmp.lt.s32.totalorder %s18, 3
      %p206 = pnand %p204, %p205
      %p207 = pneg %p206
      // Predicated region
      $region9: #{tpu_custom_call.1} parent=5 // pred_check
        _
      $region10: #{tpu_custom_call.1} parent=5 // pred_check_branch
        %209 = sbr.rel (%p206) target = $region12
      $region11: #{tpu_custom_call.1} parent=5 // pred_region
        %s210 = ssub.s32 %s18, 1
        // Predicated region
        $region13: #{tpu_custom_call.1} parent=11 // pred_check
          %p211 = pneg %p84
        $region14: #{tpu_custom_call.1} parent=11 // pred_check_branch
          %213 = sbr.rel (%p211) target = $region16
        $region15: #{tpu_custom_call.1} parent=11 // pred_region
          %s214 = smul.u32 4, %s28
          %p215 = scmp.lt.s32.totalorder %s214, 3
          %s216 = scalar_select %p215, %s214, 3
          %s217 = scalar_lea.vmem %s1, %s216
          %s218 = smul.u32 4, %s28
        $region16: #{tpu_custom_call.1} parent=11 // pred_fallthru
          _
        // Predicated region
        $region17: #{tpu_custom_call.1} parent=11 // pred_check
          %p219 = pneg %p105
        $region18: #{tpu_custom_call.1} parent=11 // pred_check_branch
          %221 = sbr.rel (%p219) target = $region20
        $region19: #{tpu_custom_call.1} parent=11 // pred_region
          _
        $region20: #{tpu_custom_call.1} parent=11 // pred_fallthru
          _
        // Predicated region
        $region21: #{tpu_custom_call.1} parent=11 // pred_check
          %p222 = pneg %p126
        $region22: #{tpu_custom_call.1} parent=11 // pred_check_branch
          %224 = sbr.rel (%p222) target = $region24
        $region23: #{tpu_custom_call.1} parent=11 // pred_region
          _
        $region24: #{tpu_custom_call.1} parent=11 // pred_fallthru
          _
        // Predicated region
        $region25: #{tpu_custom_call.1} parent=11 // pred_check
          %p225 = pneg %p147
        $region26: #{tpu_custom_call.1} parent=11 // pred_check_branch
          %227 = sbr.rel (%p225) target = $region28
        $region27: #{tpu_custom_call.1} parent=11 // pred_region
          _
        $region28: #{tpu_custom_call.1} parent=11 // pred_fallthru
          _
        // Predicated region
        $region29: #{tpu_custom_call.1} parent=11 // pred_check
          %p228 = pneg %p168
        $region30: #{tpu_custom_call.1} parent=11 // pred_check_branch
          %230 = sbr.rel (%p228) target = $region32
        $region31: #{tpu_custom_call.1} parent=11 // pred_region
          _
        $region32: #{tpu_custom_call.1} parent=11 // pred_fallthru
          _
      $region12: #{tpu_custom_call.1} parent=5 // pred_fallthru
        _
      %p231 = scmp.lt.s32.totalorder %s18, 2
      // Predicated region
      $region33: #{tpu_custom_call.1} parent=5 // pred_check
        %p232 = pneg %p231
      $region34: #{tpu_custom_call.1} parent=5 // pred_check_branch
        %234 = sbr.rel (%p232) target = $region36
      $region35: #{tpu_custom_call.1} parent=5 // pred_region
        // Predicated region
        $region37: #{tpu_custom_call.1} parent=35 // pred_check
          %p235 = pneg %p52
        $region38: #{tpu_custom_call.1} parent=35 // pred_check_branch
          %237 = sbr.rel (%p235) target = $region40
        $region39: #{tpu_custom_call.1} parent=35 // pred_region
          %s238 = sand.u32 %s42, 1
          %s239 = scalar_lea.sflag [#allocation3], %s238
          %s240 = sand.u32 %s42, 1
          %s241 = smul.addr %s240, 64
          %s242 = scalar_lea.vmem [#allocation2], %s241
          %s243 = smul.u32 4, %s26
          %245 = vsyncadd %s239, 0
          %s246 = smul.addr %s243, 2
          %s247 = smul.addr %s25, 8
          %s248 = sadd.s32 %s246, %s247
          %s249 = smul.addr %s248, 8
          %s250 = scalar_lea.hbm %s0, %s249
          %s251 = sshll.u32 %s250, 4
          %s252 = int_to_ptr.hbm [resolvable:$true] %s251
          %s253 = sshll.u32 %s242, 4
          %s254 = int_to_ptr.vmem [resolvable:$true] %s253
          %259 = dma.hbm_to_vmem [thread:$0]  %s252, 1024, %s254, %s239, 128, 128, 8
        $region40: #{tpu_custom_call.1} parent=35 // pred_fallthru
          _
      $region36: #{tpu_custom_call.1} parent=5 // pred_fallthru
        _
      %p260 = scmp.le.s32.totalorder 1, %s18
      %p261 = scmp.lt.s32.totalorder %s18, 3
      %p262 = pnand %p260, %p261
      %p263 = pneg %p262
      // Predicated region
      $region41: #{tpu_custom_call.1} parent=5 // pred_check
        _
      $region42: #{tpu_custom_call.1} parent=5 // pred_check_branch
        %265 = sbr.rel (%p262) target = $region44
      $region43: #{tpu_custom_call.1} parent=5 // pred_region
        %s266 = ssub.s32 %s18, 1
        %s267 = sand.u32 %s45, 1
        %s268 = scalar_lea.sflag [#allocation3], %s267
        %s269 = sand.u32 %s45, 1
        %s270 = smul.addr %s269, 64
        %s271 = scalar_lea.vmem [#allocation2], %s270
        // Predicated region
        $region45: #{tpu_custom_call.1} parent=43 // pred_check
          %p272 = pneg %p58
        $region46: #{tpu_custom_call.1} parent=43 // pred_check_branch
          %274 = sbr.rel (%p272) target = $region48
        $region47: #{tpu_custom_call.1} parent=43 // pred_region
          %276 = dma.done %s268, 1024
        $region48: #{tpu_custom_call.1} parent=43 // pred_fallthru
          _
        %s277 = sand.u32 %s45, 1
        %s278 = scalar_lea.sflag [#allocation3], %s277
        %s279 = sand.u32 %s45, 1
        %s280 = smul.addr %s279, 64
        %s281 = scalar_lea.vmem [#allocation2], %s280
        %p282 = pneg %p58
        %p283 = pneg %p55
        %s284 = smul.u32 4, %s28
        %p285 = scmp.lt.s32.totalorder %s284, 3
        %s286 = scalar_select %p285, %s284, 3
        %s287 = scalar_lea.vmem %s1, %s286
        %p288 = pneg %p84
        %p289 = pneg %p81
        %p290 = pneg %p105
        %p291 = pneg %p102
        %p292 = pneg %p126
        %p293 = pneg %p123
        %p294 = pneg %p147
        %p295 = pneg %p144
        %p296 = pneg %p168
        %p297 = pneg %p165
        %p298 = pneg %p196
        %p299 = pneg %p193
        %s300 = sand.u32 %s183, 1
        %s301 = scalar_lea.sflag [#allocation4], %s300
        %s302 = sand.u32 %s183, 1
        %s303 = smul.addr %s302, 64
        %s304 = scalar_lea.vmem [#allocation5], %s303
        %s305 = smul.u32 4, %s28
        %s306 = smul.u32 4, %s28
        %p307 = scmp.lt.s32.totalorder %s306, 3
        %s308 = scalar_select %p307, %s306, 3
        %s309 = scalar_lea.vmem %s1, %s308
        %s310 = smul.u32 4, %s28
        %s311 = smul.u32 4, %s28
        %v313 = vld [vmem:[%s271] sm:$0xff]
        %v314 = vld [vmem:[%s271 + $0x8] sm:$0xff]
        %v315 = vld [vmem:[%s271 + $0x10] sm:$0xff]
        %v316 = vld [vmem:[%s271 + $0x18] sm:$0xff]
        %v317 = vld [vmem:[%s271 + $0x20] sm:$0xff]
        %v318 = vld [vmem:[%s271 + $0x28] sm:$0xff]
        %v319 = vld [vmem:[%s271 + $0x30] sm:$0xff]
        %v320 = vld [vmem:[%s271 + $0x38] sm:$0xff]
        %v321 = vld [vmem:[%s309] sm:$0x1]
        %v322 = vld [vmem:[%s309 + $0x1] sm:$0x1]
        %v323 = vld [vmem:[%s309 + $0x2] sm:$0x1]
        %v324 = vld [vmem:[%s309 + $0x3] sm:$0x1]
        %v329 = vperm.slane %v321, 0
        %v330 = vperm.slane %v322, 0
        %v331 = vperm.slane %v323, 0
        %v332 = vperm.slane %v324, 0
        %333 = vset.pattern.permute.xlu0 0
        %334 = vperm.xlu0 %333, %v329
        %v335 = vpop.permute.xlu0 %334
        %337 = vset.pattern.permute.xlu0 0
        %338 = vperm.xlu0 %337, %v330
        %v339 = vpop.permute.xlu0 %338
        %341 = vset.pattern.permute.xlu0 0
        %342 = vperm.xlu0 %341, %v331
        %v343 = vpop.permute.xlu0 %342
        %345 = vset.pattern.permute.xlu0 0
        %346 = vperm.xlu0 %345, %v332
        %v347 = vpop.permute.xlu0 %346
        %v349 = vadd.f32 %v313, %v335
        %v350 = vadd.f32 %v314, %v335
        %v351 = vadd.f32 %v315, %v339
        %v352 = vadd.f32 %v316, %v339
        %v353 = vadd.f32 %v317, %v343
        %v354 = vadd.f32 %v318, %v343
        %v355 = vadd.f32 %v319, %v347
        %v356 = vadd.f32 %v320, %v347
        %v357 = vpack.c.bf16 %v349, %v349
        %v358 = vpack.c.bf16 %v350, %v350
        %v359 = vpack.c.bf16 %v351, %v351
        %v360 = vpack.c.bf16 %v352, %v352
        %v361 = vpack.c.bf16 %v353, %v353
        %v362 = vpack.c.bf16 %v354, %v354
        %v363 = vpack.c.bf16 %v355, %v355
        %v364 = vpack.c.bf16 %v356, %v356
        %v365 = vld [vmem:[%s2] sm:$0xf]
        %v366 = vld [vmem:[%s2 + $0x4] sm:$0xf]
        %v367 = vld [vmem:[%s2 + $0x8] sm:$0xf]
        %v376 = vunpack.c.l.b16 %v357
        %v377 = vunpack.c.l.b16 %v358
        %v378 = vunpack.c.l.b16 %v359
        %v379 = vunpack.c.l.b16 %v360
        %v380 = vunpack.c.l.b16 %v361
        %v381 = vunpack.c.l.b16 %v362
        %v382 = vunpack.c.l.b16 %v363
        %v383 = vunpack.c.l.b16 %v364
        %v384 = vpack.c.b16 %v377, %v376
        %v385 = vpack.c.b16 %v379, %v378
        %v386 = vpack.c.b16 %v381, %v380
        %v387 = vpack.c.b16 %v383, %v382
        %v391 = vunpack.c.l.b16 %v365
        %v392 = vunpack.c.l.b16 %v366
        %v393 = vunpack.c.l.b16 %v367
        %v394 = vpack.c.b16 %v392, %v391
        %v395 = vpack.c.b16 %v393, %v393
        %vm397 = vcmask 195584
        %v399 = vsel %vm397, %v384, 0
        %v402 = vsel %vm397, %v385, 0
        %v405 = vsel %vm397, %v386, 0
        %v408 = vsel %vm397, %v387, 0
        %vm410 = vcmask 1043456
        %v412 = vsel %vm410, %v395, 0
        %414 = vmatpush.bf16.msra.mxu0 0
        %415 = vmatpush.bf16.msra.mxu0 0
        %416 = vmatpush.bf16.msra.mxu0 0
        %417 = vmatpush.bf16.msra.mxu0 0
        %418 = vmatpush.bf16.msra.mxu0 0
        %419 = vmatpush.bf16.msra.mxu0 0
        %420 = vmatpush.bf16.msra.mxu0 %v412
        %421 = vmatpush.bf16.msra.mxu0 %v394
        %422 = vmatmul.bf16.gmra.mxu0 %v399
        %v423 = vpop.f32.mrf.mxu0
        %v424 = vadd.f32 0.0, %v423
        %v425 = vpop.f32.mrf.mxu0
        %v426 = vadd.f32 0.0, %v425
        %427 = vmatmul.bf16.gmra.mxu0 %v402
        %v428 = vpop.f32.mrf.mxu0
        %v429 = vadd.f32 0.0, %v428
        %v430 = vpop.f32.mrf.mxu0
        %v431 = vadd.f32 0.0, %v430
        %432 = vmatmul.bf16.gmra.mxu0 %v405
        %v433 = vpop.f32.mrf.mxu0
        %v434 = vadd.f32 0.0, %v433
        %v435 = vpop.f32.mrf.mxu0
        %v436 = vadd.f32 0.0, %v435
        %437 = vmatmul.bf16.gmra.mxu0 %v408
        %v438 = vpop.f32.mrf.mxu0
        %v439 = vadd.f32 0.0, %v438
        %v440 = vpop.f32.mrf.mxu0
        %v441 = vadd.f32 0.0, %v440
        %442 = vdwg.mxu0
        %443 = vxpose.xlu0.b32.start [1/16] %v424, 128
        %444 = vxpose.xlu0.b32.cont [2/16] %v426, 128
        %445 = vxpose.xlu0.b32.cont [3/16] 0.0, 128
        %446 = vxpose.xlu0.b32.cont [4/16] 0.0, 128
        %447 = vxpose.xlu0.b32.cont [5/16] 0.0, 128
        %448 = vxpose.xlu0.b32.cont [6/16] 0.0, 128
        %449 = vxpose.xlu0.b32.cont [7/16] 0.0, 128
        %450 = vxpose.xlu0.b32.cont [8/16] 0.0, 128
        %451 = vxpose.xlu0.b32.cont [9/16] 0.0, 128
        %452 = vxpose.xlu0.b32.cont [10/16] 0.0, 128
        %453 = vxpose.xlu0.b32.cont [11/16] 0.0, 128
        %454 = vxpose.xlu0.b32.cont [12/16] 0.0, 128
        %455 = vxpose.xlu0.b32.cont [13/16] 0.0, 128
        %456 = vxpose.xlu0.b32.cont [14/16] 0.0, 128
        %457 = vxpose.xlu0.b32.cont [15/16] 0.0, 128
        %458 = vxpose.xlu0.b32.end [16/16] 0.0, 128
        %v459 = vpop.trf.xlu0
        %v460 = vpop.trf.xlu0
        %v461 = vpop.trf.xlu0
        %v462 = vpop.trf.xlu0
        %v463 = vpop.trf.xlu0
        %v464 = vpop.trf.xlu0
        %v465 = vpop.trf.xlu0
        %v466 = vpop.trf.xlu0
        %v467 = vpop.trf.xlu0
        %v468 = vpop.trf.xlu0
        %v469 = vpop.trf.xlu0
        %v470 = vpop.trf.xlu0
        %v471 = vpop.trf.xlu0
        %v472 = vpop.trf.xlu0
        %v473 = vpop.trf.xlu0
        %v474 = vpop.trf.xlu0
        %475 = vxpose.xlu0.b32.start [1/16] %v429, 128
        %476 = vxpose.xlu0.b32.cont [2/16] %v431, 128
        %477 = vxpose.xlu0.b32.cont [3/16] 0.0, 128
        %478 = vxpose.xlu0.b32.cont [4/16] 0.0, 128
        %479 = vxpose.xlu0.b32.cont [5/16] 0.0, 128
        %480 = vxpose.xlu0.b32.cont [6/16] 0.0, 128
        %481 = vxpose.xlu0.b32.cont [7/16] 0.0, 128
        %482 = vxpose.xlu0.b32.cont [8/16] 0.0, 128
        %483 = vxpose.xlu0.b32.cont [9/16] 0.0, 128
        %484 = vxpose.xlu0.b32.cont [10/16] 0.0, 128
        %485 = vxpose.xlu0.b32.cont [11/16] 0.0, 128
        %486 = vxpose.xlu0.b32.cont [12/16] 0.0, 128
        %487 = vxpose.xlu0.b32.cont [13/16] 0.0, 128
        %488 = vxpose.xlu0.b32.cont [14/16] 0.0, 128
        %489 = vxpose.xlu0.b32.cont [15/16] 0.0, 128
        %490 = vxpose.xlu0.b32.end [16/16] 0.0, 128
        %v491 = vpop.trf.xlu0
        %v492 = vpop.trf.xlu0
        %v493 = vpop.trf.xlu0
        %v494 = vpop.trf.xlu0
        %v495 = vpop.trf.xlu0
        %v496 = vpop.trf.xlu0
        %v497 = vpop.trf.xlu0
        %v498 = vpop.trf.xlu0
        %v499 = vpop.trf.xlu0
        %v500 = vpop.trf.xlu0
        %v501 = vpop.trf.xlu0
        %v502 = vpop.trf.xlu0
        %v503 = vpop.trf.xlu0
        %v504 = vpop.trf.xlu0
        %v505 = vpop.trf.xlu0
        %v506 = vpop.trf.xlu0
        %507 = vxpose.xlu0.b32.start [1/16] %v434, 128
        %508 = vxpose.xlu0.b32.cont [2/16] %v436, 128
        %509 = vxpose.xlu0.b32.cont [3/16] 0.0, 128
        %510 = vxpose.xlu0.b32.cont [4/16] 0.0, 128
        %511 = vxpose.xlu0.b32.cont [5/16] 0.0, 128
        %512 = vxpose.xlu0.b32.cont [6/16] 0.0, 128
        %513 = vxpose.xlu0.b32.cont [7/16] 0.0, 128
        %514 = vxpose.xlu0.b32.cont [8/16] 0.0, 128
        %515 = vxpose.xlu0.b32.cont [9/16] 0.0, 128
        %516 = vxpose.xlu0.b32.cont [10/16] 0.0, 128
        %517 = vxpose.xlu0.b32.cont [11/16] 0.0, 128
        %518 = vxpose.xlu0.b32.cont [12/16] 0.0, 128
        %519 = vxpose.xlu0.b32.cont [13/16] 0.0, 128
        %520 = vxpose.xlu0.b32.cont [14/16] 0.0, 128
        %521 = vxpose.xlu0.b32.cont [15/16] 0.0, 128
        %522 = vxpose.xlu0.b32.end [16/16] 0.0, 128
        %v523 = vpop.trf.xlu0
        %v524 = vpop.trf.xlu0
        %v525 = vpop.trf.xlu0
        %v526 = vpop.trf.xlu0
        %v527 = vpop.trf.xlu0
        %v528 = vpop.trf.xlu0
        %v529 = vpop.trf.xlu0
        %v530 = vpop.trf.xlu0
        %v531 = vpop.trf.xlu0
        %v532 = vpop.trf.xlu0
        %v533 = vpop.trf.xlu0
        %v534 = vpop.trf.xlu0
        %v535 = vpop.trf.xlu0
        %v536 = vpop.trf.xlu0
        %v537 = vpop.trf.xlu0
        %v538 = vpop.trf.xlu0
        %539 = vxpose.xlu0.b32.start [1/16] %v439, 128
        %540 = vxpose.xlu0.b32.cont [2/16] %v441, 128
        %541 = vxpose.xlu0.b32.cont [3/16] 0.0, 128
        %542 = vxpose.xlu0.b32.cont [4/16] 0.0, 128
        %543 = vxpose.xlu0.b32.cont [5/16] 0.0, 128
        %544 = vxpose.xlu0.b32.cont [6/16] 0.0, 128
        %545 = vxpose.xlu0.b32.cont [7/16] 0.0, 128
        %546 = vxpose.xlu0.b32.cont [8/16] 0.0, 128
        %547 = vxpose.xlu0.b32.cont [9/16] 0.0, 128
        %548 = vxpose.xlu0.b32.cont [10/16] 0.0, 128
        %549 = vxpose.xlu0.b32.cont [11/16] 0.0, 128
        %550 = vxpose.xlu0.b32.cont [12/16] 0.0, 128
        %551 = vxpose.xlu0.b32.cont [13/16] 0.0, 128
        %552 = vxpose.xlu0.b32.cont [14/16] 0.0, 128
        %553 = vxpose.xlu0.b32.cont [15/16] 0.0, 128
        %554 = vxpose.xlu0.b32.end [16/16] 0.0, 128
        %v555 = vpop.trf.xlu0
        %v556 = vpop.trf.xlu0
        %v557 = vpop.trf.xlu0
        %v558 = vpop.trf.xlu0
        %v559 = vpop.trf.xlu0
        %v560 = vpop.trf.xlu0
        %v561 = vpop.trf.xlu0
        %v562 = vpop.trf.xlu0
        %v563 = vpop.trf.xlu0
        %v564 = vpop.trf.xlu0
        %v565 = vpop.trf.xlu0
        %v566 = vpop.trf.xlu0
        %v567 = vpop.trf.xlu0
        %v568 = vpop.trf.xlu0
        %v569 = vpop.trf.xlu0
        %v570 = vpop.trf.xlu0
        %v571 = vpack.c.bf16 %v459, %v459
        %v572 = vpack.c.bf16 %v460, %v460
        %v573 = vpack.c.bf16 %v461, %v461
        %v574 = vpack.c.bf16 %v462, %v462
        %v575 = vpack.c.bf16 %v463, %v463
        %v576 = vpack.c.bf16 %v464, %v464
        %v577 = vpack.c.bf16 %v491, %v491
        %v578 = vpack.c.bf16 %v492, %v492
        %v579 = vpack.c.bf16 %v493, %v493
        %v580 = vpack.c.bf16 %v494, %v494
        %v581 = vpack.c.bf16 %v495, %v495
        %v582 = vpack.c.bf16 %v496, %v496
        %v583 = vpack.c.bf16 %v523, %v523
        %v584 = vpack.c.bf16 %v524, %v524
        %v585 = vpack.c.bf16 %v525, %v525
        %v586 = vpack.c.bf16 %v526, %v526
        %v587 = vpack.c.bf16 %v527, %v527
        %v588 = vpack.c.bf16 %v528, %v528
        %v589 = vpack.c.bf16 %v555, %v555
        %v590 = vpack.c.bf16 %v556, %v556
        %v591 = vpack.c.bf16 %v557, %v557
        %v592 = vpack.c.bf16 %v558, %v558
        %v593 = vpack.c.bf16 %v559, %v559
        %v594 = vpack.c.bf16 %v560, %v560
        %v595 = vld [vmem:[%s3] sm:$0xf]
        %v596 = vld [vmem:[%s3 + $0x4] sm:$0xf]
        %v621 = vunpack.c.l.b16 %v571
        %v622 = vunpack.c.l.b16 %v572
        %v623 = vunpack.c.l.b16 %v573
        %v624 = vunpack.c.l.b16 %v574
        %v625 = vunpack.c.l.b16 %v575
        %v626 = vunpack.c.l.b16 %v576
        %v627 = vunpack.c.l.b16 %v577
        %v628 = vunpack.c.l.b16 %v578
        %v629 = vunpack.c.l.b16 %v579
        %v630 = vunpack.c.l.b16 %v580
        %v631 = vunpack.c.l.b16 %v581
        %v632 = vunpack.c.l.b16 %v582
        %v633 = vunpack.c.l.b16 %v583
        %v634 = vunpack.c.l.b16 %v584
        %v635 = vunpack.c.l.b16 %v585
        %v636 = vunpack.c.l.b16 %v586
        %v637 = vunpack.c.l.b16 %v587
        %v638 = vunpack.c.l.b16 %v588
        %v639 = vunpack.c.l.b16 %v589
        %v640 = vunpack.c.l.b16 %v590
        %v641 = vunpack.c.l.b16 %v591
        %v642 = vunpack.c.l.b16 %v592
        %v643 = vunpack.c.l.b16 %v593
        %v644 = vunpack.c.l.b16 %v594
        %v645 = vpack.c.b16 %v622, %v621
        %v646 = vpack.c.b16 %v624, %v623
        %v647 = vpack.c.b16 %v626, %v625
        %v648 = vpack.c.b16 %v628, %v627
        %v649 = vpack.c.b16 %v630, %v629
        %v650 = vpack.c.b16 %v632, %v631
        %v651 = vpack.c.b16 %v634, %v633
        %v652 = vpack.c.b16 %v636, %v635
        %v653 = vpack.c.b16 %v638, %v637
        %v654 = vpack.c.b16 %v640, %v639
        %v655 = vpack.c.b16 %v642, %v641
        %v656 = vpack.c.b16 %v644, %v643
        %v659 = vunpack.c.l.b16 %v595
        %v660 = vunpack.c.l.b16 %v596
        %v661 = vpack.c.b16 %v660, %v659
        %vm663 = vcmask 130048
        %v665 = vsel %vm663, %v645, 0
        %v668 = vsel %vm663, %v646, 0
        %v671 = vsel %vm663, %v647, 0
        %v674 = vsel %vm663, %v648, 0
        %v677 = vsel %vm663, %v649, 0
        %v680 = vsel %vm663, %v650, 0
        %v683 = vsel %vm663, %v651, 0
        %v686 = vsel %vm663, %v652, 0
        %v689 = vsel %vm663, %v653, 0
        %v692 = vsel %vm663, %v654, 0
        %v695 = vsel %vm663, %v655, 0
        %v698 = vsel %vm663, %v656, 0
        %700 = vmatpush.bf16.msra.mxu0 0
        %701 = vmatpush.bf16.msra.mxu0 0
        %702 = vmatpush.bf16.msra.mxu0 0
        %703 = vmatpush.bf16.msra.mxu0 0
        %704 = vmatpush.bf16.msra.mxu0 0
        %705 = vmatpush.bf16.msra.mxu0 0
        %706 = vmatpush.bf16.msra.mxu0 0
        %707 = vmatpush.bf16.msra.mxu0 %v661
        %708 = vmatmul.bf16.gmra.mxu0 %v665
        %v709 = vpop.f32.mrf.mxu0
        %v710 = vadd.f32 0.0, %v709
        %v711 = vpop.f32.mrf.mxu0
        %v712 = vadd.f32 0.0, %v711
        %713 = vmatmul.bf16.gmra.mxu0 %v668
        %v714 = vpop.f32.mrf.mxu0
        %v715 = vadd.f32 0.0, %v714
        %v716 = vpop.f32.mrf.mxu0
        %v717 = vadd.f32 0.0, %v716
        %718 = vmatmul.bf16.gmra.mxu0 %v671
        %v719 = vpop.f32.mrf.mxu0
        %v720 = vadd.f32 0.0, %v719
        %v721 = vpop.f32.mrf.mxu0
        %v722 = vadd.f32 0.0, %v721
        %723 = vmatmul.bf16.gmra.mxu0 %v674
        %v724 = vpop.f32.mrf.mxu0
        %v725 = vadd.f32 0.0, %v724
        %v726 = vpop.f32.mrf.mxu0
        %v727 = vadd.f32 0.0, %v726
        %728 = vmatmul.bf16.gmra.mxu0 %v677
        %v729 = vpop.f32.mrf.mxu0
        %v730 = vadd.f32 0.0, %v729
        %v731 = vpop.f32.mrf.mxu0
        %v732 = vadd.f32 0.0, %v731
        %733 = vmatmul.bf16.gmra.mxu0 %v680
        %v734 = vpop.f32.mrf.mxu0
        %v735 = vadd.f32 0.0, %v734
        %v736 = vpop.f32.mrf.mxu0
        %v737 = vadd.f32 0.0, %v736
        %738 = vmatmul.bf16.gmra.mxu0 %v683
        %v739 = vpop.f32.mrf.mxu0
        %v740 = vadd.f32 0.0, %v739
        %v741 = vpop.f32.mrf.mxu0
        %v742 = vadd.f32 0.0, %v741
        %743 = vmatmul.bf16.gmra.mxu0 %v686
        %v744 = vpop.f32.mrf.mxu0
        %v745 = vadd.f32 0.0, %v744
        %v746 = vpop.f32.mrf.mxu0
        %v747 = vadd.f32 0.0, %v746
        %748 = vmatmul.bf16.gmra.mxu0 %v689
        %v749 = vpop.f32.mrf.mxu0
        %v750 = vadd.f32 0.0, %v749
        %v751 = vpop.f32.mrf.mxu0
        %v752 = vadd.f32 0.0, %v751
        %753 = vmatmul.bf16.gmra.mxu0 %v692
        %v754 = vpop.f32.mrf.mxu0
        %v755 = vadd.f32 0.0, %v754
        %v756 = vpop.f32.mrf.mxu0
        %v757 = vadd.f32 0.0, %v756
        %758 = vmatmul.bf16.gmra.mxu0 %v695
        %v759 = vpop.f32.mrf.mxu0
        %v760 = vadd.f32 0.0, %v759
        %v761 = vpop.f32.mrf.mxu0
        %v762 = vadd.f32 0.0, %v761
        %763 = vmatmul.bf16.gmra.mxu0 %v698
        %v764 = vpop.f32.mrf.mxu0
        %v765 = vadd.f32 0.0, %v764
        %v766 = vpop.f32.mrf.mxu0
        %v767 = vadd.f32 0.0, %v766
        %768 = vdwg.mxu0
        %vm769 = vcmp.ge.f32.partialorder %v710, 0.0
        %vm770 = vcmp.ge.f32.partialorder %v712, 0.0
        %vm771 = vcmp.ge.f32.partialorder %v715, 0.0
        %vm772 = vcmp.ge.f32.partialorder %v717, 0.0
        %vm773 = vcmp.ge.f32.partialorder %v720, 0.0
        %vm774 = vcmp.ge.f32.partialorder %v722, 0.0
        %vm775 = vcmp.ge.f32.partialorder %v725, 0.0
        %vm776 = vcmp.ge.f32.partialorder %v727, 0.0
        %vm777 = vcmp.ge.f32.partialorder %v730, 0.0
        %vm778 = vcmp.ge.f32.partialorder %v732, 0.0
        %vm779 = vcmp.ge.f32.partialorder %v735, 0.0
        %vm780 = vcmp.ge.f32.partialorder %v737, 0.0
        %vm781 = vcmp.ge.f32.partialorder %v740, 0.0
        %vm782 = vcmp.ge.f32.partialorder %v742, 0.0
        %vm783 = vcmp.ge.f32.partialorder %v745, 0.0
        %vm784 = vcmp.ge.f32.partialorder %v747, 0.0
        %vm785 = vcmp.ge.f32.partialorder %v750, 0.0
        %vm786 = vcmp.ge.f32.partialorder %v752, 0.0
        %vm787 = vcmp.ge.f32.partialorder %v755, 0.0
        %vm788 = vcmp.ge.f32.partialorder %v757, 0.0
        %vm789 = vcmp.ge.f32.partialorder %v760, 0.0
        %vm790 = vcmp.ge.f32.partialorder %v762, 0.0
        %vm791 = vcmp.ge.f32.partialorder %v765, 0.0
        %vm792 = vcmp.ge.f32.partialorder %v767, 0.0
        %v793 = vmul.f32 %v710, 0.2
        %v794 = vmul.f32 %v712, 0.2
        %v795 = vmul.f32 %v715, 0.2
        %v796 = vmul.f32 %v717, 0.2
        %v797 = vmul.f32 %v720, 0.2
        %v798 = vmul.f32 %v722, 0.2
        %v799 = vmul.f32 %v725, 0.2
        %v800 = vmul.f32 %v727, 0.2
        %v801 = vmul.f32 %v730, 0.2
        %v802 = vmul.f32 %v732, 0.2
        %v803 = vmul.f32 %v735, 0.2
        %v804 = vmul.f32 %v737, 0.2
        %v805 = vmul.f32 %v740, 0.2
        %v806 = vmul.f32 %v742, 0.2
        %v807 = vmul.f32 %v745, 0.2
        %v808 = vmul.f32 %v747, 0.2
        %v809 = vmul.f32 %v750, 0.2
        %v810 = vmul.f32 %v752, 0.2
        %v811 = vmul.f32 %v755, 0.2
        %v812 = vmul.f32 %v757, 0.2
        %v813 = vmul.f32 %v760, 0.2
        %v814 = vmul.f32 %v762, 0.2
        %v815 = vmul.f32 %v765, 0.2
        %v816 = vmul.f32 %v767, 0.2
        %v817 = vsel %vm769, %v710, %v793
        %v818 = vsel %vm770, %v712, %v794
        %v819 = vsel %vm771, %v715, %v795
        %v820 = vsel %vm772, %v717, %v796
        %v821 = vsel %vm773, %v720, %v797
        %v822 = vsel %vm774, %v722, %v798
        %v823 = vsel %vm775, %v725, %v799
        %v824 = vsel %vm776, %v727, %v800
        %v825 = vsel %vm777, %v730, %v801
        %v826 = vsel %vm778, %v732, %v802
        %v827 = vsel %vm779, %v735, %v803
        %v828 = vsel %vm780, %v737, %v804
        %v829 = vsel %vm781, %v740, %v805
        %v830 = vsel %vm782, %v742, %v806
        %v831 = vsel %vm783, %v745, %v807
        %v832 = vsel %vm784, %v747, %v808
        %v833 = vsel %vm785, %v750, %v809
        %v834 = vsel %vm786, %v752, %v810
        %v835 = vsel %vm787, %v755, %v811
        %v836 = vsel %vm788, %v757, %v812
        %v837 = vsel %vm789, %v760, %v813
        %v838 = vsel %vm790, %v762, %v814
        %v839 = vsel %vm791, %v765, %v815
        %v840 = vsel %vm792, %v767, %v816
        %v841 = vpack.c.bf16 %v818, %v817
        %v842 = vpack.c.bf16 %v820, %v819
        %v843 = vpack.c.bf16 %v822, %v821
        %v844 = vpack.c.bf16 %v824, %v823
        %v845 = vpack.c.bf16 %v826, %v825
        %v846 = vpack.c.bf16 %v828, %v827
        %v847 = vpack.c.bf16 %v830, %v829
        %v848 = vpack.c.bf16 %v832, %v831
        %v849 = vpack.c.bf16 %v834, %v833
        %v850 = vpack.c.bf16 %v836, %v835
        %v851 = vpack.c.bf16 %v838, %v837
        %v852 = vpack.c.bf16 %v840, %v839
        %v853 = vld [vmem:[%s4] sm:$0xf]
        %v854 = vld [vmem:[%s4 + $0x4] sm:$0xf]
        %v855 = vld [vmem:[%s4 + $0x8] sm:$0xf]
        %v856 = vld [vmem:[%s4 + $0xc] sm:$0xf]
        %v861 = vunpack.c.l.b16 %v853
        %v862 = vunpack.c.l.b16 %v854
        %v863 = vunpack.c.l.b16 %v855
        %v864 = vunpack.c.l.b16 %v856
        %v865 = vpack.c.b16 %v862, %v861
        %v866 = vpack.c.b16 %v864, %v863
        %vm869 = vcmask 261120
        %v871 = vsel %vm869, %v841, 0
        %v874 = vsel %vm869, %v842, 0
        %v877 = vsel %vm869, %v843, 0
        %v880 = vsel %vm869, %v844, 0
        %v883 = vsel %vm869, %v845, 0
        %v886 = vsel %vm869, %v846, 0
        %v889 = vsel %vm869, %v847, 0
        %v892 = vsel %vm869, %v848, 0
        %v895 = vsel %vm869, %v849, 0
        %v898 = vsel %vm869, %v850, 0
        %v901 = vsel %vm869, %v851, 0
        %v904 = vsel %vm869, %v852, 0
        %906 = vmatpush.bf16.msra.mxu0 0
        %907 = vmatpush.bf16.msra.mxu0 0
        %908 = vmatpush.bf16.msra.mxu0 0
        %909 = vmatpush.bf16.msra.mxu0 0
        %910 = vmatpush.bf16.msra.mxu0 0
        %911 = vmatpush.bf16.msra.mxu0 0
        %912 = vmatpush.bf16.msra.mxu0 %v866
        %913 = vmatpush.bf16.msra.mxu0 %v865
        %914 = vmatmul.bf16.gmra.mxu0 %v871
        %v915 = vpop.f32.mrf.mxu0
        %v916 = vadd.f32 0.0, %v915
        %v917 = vpop.f32.mrf.mxu0
        %v918 = vadd.f32 0.0, %v917
        %919 = vmatmul.bf16.gmra.mxu0 %v874
        %v920 = vpop.f32.mrf.mxu0
        %v921 = vadd.f32 0.0, %v920
        %v922 = vpop.f32.mrf.mxu0
        %v923 = vadd.f32 0.0, %v922
        %924 = vmatmul.bf16.gmra.mxu0 %v877
        %v925 = vpop.f32.mrf.mxu0
        %v926 = vadd.f32 0.0, %v925
        %v927 = vpop.f32.mrf.mxu0
        %v928 = vadd.f32 0.0, %v927
        %929 = vmatmul.bf16.gmra.mxu0 %v880
        %v930 = vpop.f32.mrf.mxu0
        %v931 = vadd.f32 0.0, %v930
        %v932 = vpop.f32.mrf.mxu0
        %v933 = vadd.f32 0.0, %v932
        %934 = vmatmul.bf16.gmra.mxu0 %v883
        %v935 = vpop.f32.mrf.mxu0
        %v936 = vadd.f32 0.0, %v935
        %v937 = vpop.f32.mrf.mxu0
        %v938 = vadd.f32 0.0, %v937
        %939 = vmatmul.bf16.gmra.mxu0 %v886
        %v940 = vpop.f32.mrf.mxu0
        %v941 = vadd.f32 0.0, %v940
        %v942 = vpop.f32.mrf.mxu0
        %v943 = vadd.f32 0.0, %v942
        %944 = vmatmul.bf16.gmra.mxu0 %v889
        %v945 = vpop.f32.mrf.mxu0
        %v946 = vadd.f32 0.0, %v945
        %v947 = vpop.f32.mrf.mxu0
        %v948 = vadd.f32 0.0, %v947
        %949 = vmatmul.bf16.gmra.mxu0 %v892
        %v950 = vpop.f32.mrf.mxu0
        %v951 = vadd.f32 0.0, %v950
        %v952 = vpop.f32.mrf.mxu0
        %v953 = vadd.f32 0.0, %v952
        %954 = vmatmul.bf16.gmra.mxu0 %v895
        %v955 = vpop.f32.mrf.mxu0
        %v956 = vadd.f32 0.0, %v955
        %v957 = vpop.f32.mrf.mxu0
        %v958 = vadd.f32 0.0, %v957
        %959 = vmatmul.bf16.gmra.mxu0 %v898
        %v960 = vpop.f32.mrf.mxu0
        %v961 = vadd.f32 0.0, %v960
        %v962 = vpop.f32.mrf.mxu0
        %v963 = vadd.f32 0.0, %v962
        %964 = vmatmul.bf16.gmra.mxu0 %v901
        %v965 = vpop.f32.mrf.mxu0
        %v966 = vadd.f32 0.0, %v965
        %v967 = vpop.f32.mrf.mxu0
        %v968 = vadd.f32 0.0, %v967
        %969 = vmatmul.bf16.gmra.mxu0 %v904
        %v970 = vpop.f32.mrf.mxu0
        %v971 = vadd.f32 0.0, %v970
        %v972 = vpop.f32.mrf.mxu0
        %v973 = vadd.f32 0.0, %v972
        %974 = vdwg.mxu0
        %975 = vxpose.xlu0.b32.start [1/16] %v916, 128
        %976 = vxpose.xlu0.b32.cont [2/16] %v918, 128
        %977 = vxpose.xlu0.b32.cont [3/16] %v921, 128
        %978 = vxpose.xlu0.b32.cont [4/16] %v923, 128
        %979 = vxpose.xlu0.b32.cont [5/16] %v926, 128
        %980 = vxpose.xlu0.b32.cont [6/16] %v928, 128
        %981 = vxpose.xlu0.b32.cont [7/16] 0.0, 128
        %982 = vxpose.xlu0.b32.cont [8/16] 0.0, 128
        %983 = vxpose.xlu0.b32.cont [9/16] 0.0, 128
        %984 = vxpose.xlu0.b32.cont [10/16] 0.0, 128
        %985 = vxpose.xlu0.b32.cont [11/16] 0.0, 128
        %986 = vxpose.xlu0.b32.cont [12/16] 0.0, 128
        %987 = vxpose.xlu0.b32.cont [13/16] 0.0, 128
        %988 = vxpose.xlu0.b32.cont [14/16] 0.0, 128
        %989 = vxpose.xlu0.b32.cont [15/16] 0.0, 128
        %990 = vxpose.xlu0.b32.end [16/16] 0.0, 128
        %v991 = vpop.trf.xlu0
        %v992 = vpop.trf.xlu0
        %v993 = vpop.trf.xlu0
        %v994 = vpop.trf.xlu0
        %v995 = vpop.trf.xlu0
        %v996 = vpop.trf.xlu0
        %v997 = vpop.trf.xlu0
        %v998 = vpop.trf.xlu0
        %v999 = vpop.trf.xlu0
        %v1000 = vpop.trf.xlu0
        %v1001 = vpop.trf.xlu0
        %v1002 = vpop.trf.xlu0
        %v1003 = vpop.trf.xlu0
        %v1004 = vpop.trf.xlu0
        %v1005 = vpop.trf.xlu0
        %v1006 = vpop.trf.xlu0
        %1007 = vxpose.xlu0.b32.start [1/16] %v931, 128
        %1008 = vxpose.xlu0.b32.cont [2/16] %v933, 128
        %1009 = vxpose.xlu0.b32.cont [3/16] %v936, 128
        %1010 = vxpose.xlu0.b32.cont [4/16] %v938, 128
        %1011 = vxpose.xlu0.b32.cont [5/16] %v941, 128
        %1012 = vxpose.xlu0.b32.cont [6/16] %v943, 128
        %1013 = vxpose.xlu0.b32.cont [7/16] 0.0, 128
        %1014 = vxpose.xlu0.b32.cont [8/16] 0.0, 128
        %1015 = vxpose.xlu0.b32.cont [9/16] 0.0, 128
        %1016 = vxpose.xlu0.b32.cont [10/16] 0.0, 128
        %1017 = vxpose.xlu0.b32.cont [11/16] 0.0, 128
        %1018 = vxpose.xlu0.b32.cont [12/16] 0.0, 128
        %1019 = vxpose.xlu0.b32.cont [13/16] 0.0, 128
        %1020 = vxpose.xlu0.b32.cont [14/16] 0.0, 128
        %1021 = vxpose.xlu0.b32.cont [15/16] 0.0, 128
        %1022 = vxpose.xlu0.b32.end [16/16] 0.0, 128
        %v1023 = vpop.trf.xlu0
        %v1024 = vpop.trf.xlu0
        %v1025 = vpop.trf.xlu0
        %v1026 = vpop.trf.xlu0
        %v1027 = vpop.trf.xlu0
        %v1028 = vpop.trf.xlu0
        %v1029 = vpop.trf.xlu0
        %v1030 = vpop.trf.xlu0
        %v1031 = vpop.trf.xlu0
        %v1032 = vpop.trf.xlu0
        %v1033 = vpop.trf.xlu0
        %v1034 = vpop.trf.xlu0
        %v1035 = vpop.trf.xlu0
        %v1036 = vpop.trf.xlu0
        %v1037 = vpop.trf.xlu0
        %v1038 = vpop.trf.xlu0
        %1039 = vxpose.xlu0.b32.start [1/16] %v946, 128
        %1040 = vxpose.xlu0.b32.cont [2/16] %v948, 128
        %1041 = vxpose.xlu0.b32.cont [3/16] %v951, 128
        %1042 = vxpose.xlu0.b32.cont [4/16] %v953, 128
        %1043 = vxpose.xlu0.b32.cont [5/16] %v956, 128
        %1044 = vxpose.xlu0.b32.cont [6/16] %v958, 128
        %1045 = vxpose.xlu0.b32.cont [7/16] 0.0, 128
        %1046 = vxpose.xlu0.b32.cont [8/16] 0.0, 128
        %1047 = vxpose.xlu0.b32.cont [9/16] 0.0, 128
        %1048 = vxpose.xlu0.b32.cont [10/16] 0.0, 128
        %1049 = vxpose.xlu0.b32.cont [11/16] 0.0, 128
        %1050 = vxpose.xlu0.b32.cont [12/16] 0.0, 128
        %1051 = vxpose.xlu0.b32.cont [13/16] 0.0, 128
        %1052 = vxpose.xlu0.b32.cont [14/16] 0.0, 128
        %1053 = vxpose.xlu0.b32.cont [15/16] 0.0, 128
        %1054 = vxpose.xlu0.b32.end [16/16] 0.0, 128
        %v1055 = vpop.trf.xlu0
        %v1056 = vpop.trf.xlu0
        %v1057 = vpop.trf.xlu0
        %v1058 = vpop.trf.xlu0
        %v1059 = vpop.trf.xlu0
        %v1060 = vpop.trf.xlu0
        %v1061 = vpop.trf.xlu0
        %v1062 = vpop.trf.xlu0
        %v1063 = vpop.trf.xlu0
        %v1064 = vpop.trf.xlu0
        %v1065 = vpop.trf.xlu0
        %v1066 = vpop.trf.xlu0
        %v1067 = vpop.trf.xlu0
        %v1068 = vpop.trf.xlu0
        %v1069 = vpop.trf.xlu0
        %v1070 = vpop.trf.xlu0
        %1071 = vxpose.xlu0.b32.start [1/16] %v961, 128
        %1072 = vxpose.xlu0.b32.cont [2/16] %v963, 128
        %1073 = vxpose.xlu0.b32.cont [3/16] %v966, 128
        %1074 = vxpose.xlu0.b32.cont [4/16] %v968, 128
        %1075 = vxpose.xlu0.b32.cont [5/16] %v971, 128
        %1076 = vxpose.xlu0.b32.cont [6/16] %v973, 128
        %1077 = vxpose.xlu0.b32.cont [7/16] 0.0, 128
        %1078 = vxpose.xlu0.b32.cont [8/16] 0.0, 128
        %1079 = vxpose.xlu0.b32.cont [9/16] 0.0, 128
        %1080 = vxpose.xlu0.b32.cont [10/16] 0.0, 128
        %1081 = vxpose.xlu0.b32.cont [11/16] 0.0, 128
        %1082 = vxpose.xlu0.b32.cont [12/16] 0.0, 128
        %1083 = vxpose.xlu0.b32.cont [13/16] 0.0, 128
        %1084 = vxpose.xlu0.b32.cont [14/16] 0.0, 128
        %1085 = vxpose.xlu0.b32.cont [15/16] 0.0, 128
        %1086 = vxpose.xlu0.b32.end [16/16] 0.0, 128
        %v1087 = vpop.trf.xlu0
        %v1088 = vpop.trf.xlu0
        %v1089 = vpop.trf.xlu0
        %v1090 = vpop.trf.xlu0
        %v1091 = vpop.trf.xlu0
        %v1092 = vpop.trf.xlu0
        %v1093 = vpop.trf.xlu0
        %v1094 = vpop.trf.xlu0
        %v1095 = vpop.trf.xlu0
        %v1096 = vpop.trf.xlu0
        %v1097 = vpop.trf.xlu0
        %v1098 = vpop.trf.xlu0
        %v1099 = vpop.trf.xlu0
        %v1100 = vpop.trf.xlu0
        %v1101 = vpop.trf.xlu0
        %v1102 = vpop.trf.xlu0
        %v1103 = vpack.c.bf16 %v991, %v991
        %v1104 = vpack.c.bf16 %v992, %v992
        %v1105 = vpack.c.bf16 %v1023, %v1023
        %v1106 = vpack.c.bf16 %v1024, %v1024
        %v1107 = vpack.c.bf16 %v1055, %v1055
        %v1108 = vpack.c.bf16 %v1056, %v1056
        %v1109 = vpack.c.bf16 %v1087, %v1087
        %v1110 = vpack.c.bf16 %v1088, %v1088
        %v1111 = vld [vmem:[%s5] sm:$0xf]
        %v1112 = vld [vmem:[%s5 + $0x4] sm:$0xf]
        %v1113 = vld [vmem:[%s5 + $0x8] sm:$0xf]
        %v1114 = vld [vmem:[%s5 + $0xc] sm:$0xf]
        %v1115 = vld [vmem:[%s5 + $0x10] sm:$0xf]
        %v1116 = vld [vmem:[%s5 + $0x14] sm:$0xf]
        %v1125 = vunpack.c.l.b16 %v1103
        %v1126 = vunpack.c.l.b16 %v1104
        %v1127 = vunpack.c.l.b16 %v1105
        %v1128 = vunpack.c.l.b16 %v1106
        %v1129 = vunpack.c.l.b16 %v1107
        %v1130 = vunpack.c.l.b16 %v1108
        %v1131 = vunpack.c.l.b16 %v1109
        %v1132 = vunpack.c.l.b16 %v1110
        %v1133 = vpack.c.b16 %v1126, %v1125
        %v1134 = vpack.c.b16 %v1128, %v1127
        %v1135 = vpack.c.b16 %v1130, %v1129
        %v1136 = vpack.c.b16 %v1132, %v1131
        %v1143 = vunpack.c.l.b16 %v1111
        %v1144 = vunpack.c.l.b16 %v1112
        %v1145 = vunpack.c.l.b16 %v1113
        %v1146 = vunpack.c.l.b16 %v1114
        %v1147 = vunpack.c.l.b16 %v1115
        %v1148 = vunpack.c.l.b16 %v1116
        %v1149 = vpack.c.b16 %v1144, %v1143
        %v1150 = vpack.c.b16 %v1146, %v1145
        %v1151 = vpack.c.b16 %v1148, %v1147
        %vm1155 = vcmask 392192
        %v1157 = vsel %vm1155, %v1133, 0
        %v1160 = vsel %vm1155, %v1134, 0
        %v1163 = vsel %vm1155, %v1135, 0
        %v1166 = vsel %vm1155, %v1136, 0
        %1168 = vmatpush.bf16.msra.mxu0 0
        %1169 = vmatpush.bf16.msra.mxu0 0
        %1170 = vmatpush.bf16.msra.mxu0 0
        %1171 = vmatpush.bf16.msra.mxu0 0
        %1172 = vmatpush.bf16.msra.mxu0 0
        %1173 = vmatpush.bf16.msra.mxu0 %v1151
        %1174 = vmatpush.bf16.msra.mxu0 %v1150
        %1175 = vmatpush.bf16.msra.mxu0 %v1149
        %1176 = vmatmul.bf16.gmra.mxu0 %v1157
        %v1177 = vpop.f32.mrf.mxu0
        %v1178 = vadd.f32 0.0, %v1177
        %v1179 = vpop.f32.mrf.mxu0
        %v1180 = vadd.f32 0.0, %v1179
        %1181 = vmatmul.bf16.gmra.mxu0 %v1160
        %v1182 = vpop.f32.mrf.mxu0
        %v1183 = vadd.f32 0.0, %v1182
        %v1184 = vpop.f32.mrf.mxu0
        %v1185 = vadd.f32 0.0, %v1184
        %1186 = vmatmul.bf16.gmra.mxu0 %v1163
        %v1187 = vpop.f32.mrf.mxu0
        %v1188 = vadd.f32 0.0, %v1187
        %v1189 = vpop.f32.mrf.mxu0
        %v1190 = vadd.f32 0.0, %v1189
        %1191 = vmatmul.bf16.gmra.mxu0 %v1166
        %v1192 = vpop.f32.mrf.mxu0
        %v1193 = vadd.f32 0.0, %v1192
        %v1194 = vpop.f32.mrf.mxu0
        %v1195 = vadd.f32 0.0, %v1194
        %1196 = vdwg.mxu0
        %1197 = vst.msk [vmem:[%s304] sm:$0xff] %vm397, %v1178
        %1198 = vst.msk [vmem:[%s304 + $0x8] sm:$0xff] %vm397, %v1180
        %1199 = vst.msk [vmem:[%s304 + $0x10] sm:$0xff] %vm397, %v1183
        %1200 = vst.msk [vmem:[%s304 + $0x18] sm:$0xff] %vm397, %v1185
        %1201 = vst.msk [vmem:[%s304 + $0x20] sm:$0xff] %vm397, %v1188
        %1202 = vst.msk [vmem:[%s304 + $0x28] sm:$0xff] %vm397, %v1190
        %1203 = vst.msk [vmem:[%s304 + $0x30] sm:$0xff] %vm397, %v1193
        %1204 = vst.msk [vmem:[%s304 + $0x38] sm:$0xff] %vm397, %v1195
        %s1205 = sand.u32 %s183, 1
        %s1206 = scalar_lea.sflag [#allocation4], %s1205
        %s1207 = sand.u32 %s183, 1
        %s1208 = smul.addr %s1207, 64
        %s1209 = scalar_lea.vmem [#allocation5], %s1208
        // Predicated region
        $region49: #{tpu_custom_call.1} parent=43 // pred_check
          %p1210 = pneg %p193
        $region50: #{tpu_custom_call.1} parent=43 // pred_check_branch
          %1212 = sbr.rel (%p1210) target = $region52
        $region51: #{tpu_custom_call.1} parent=43 // pred_region
          %s1213 = smul.u32 4, %s28
          %1215 = vsyncadd %s1206, 0
          %s1216 = smul.addr %s1213, 2
          %s1217 = smul.addr %s27, 8
          %s1218 = sadd.s32 %s1216, %s1217
          %s1219 = smul.addr %s1218, 8
          %s1220 = scalar_lea.hbm %s6, %s1219
          %s1221 = sshll.u32 %s1209, 4
          %s1222 = int_to_ptr.vmem [resolvable:$true] %s1221
          %s1223 = sshll.u32 %s1220, 4
          %s1224 = int_to_ptr.hbm [resolvable:$true] %s1223
          %1229 = dma.vmem_to_hbm [thread:$0]  %s1222, 1024, %s1224, %s1206, 128, 128, 8
        $region52: #{tpu_custom_call.1} parent=43 // pred_fallthru
          _
      $region44: #{tpu_custom_call.1} parent=5 // pred_fallthru
        _
      %p1230 = scmp.le.s32.totalorder 2, %s18
      // Predicated region
      $region53: #{tpu_custom_call.1} parent=5 // pred_check
        %p1231 = pneg %p1230
      $region54: #{tpu_custom_call.1} parent=5 // pred_check_branch
        %1233 = sbr.rel (%p1231) target = $region56
      $region55: #{tpu_custom_call.1} parent=5 // pred_region
        %s1234 = ssub.s32 %s18, 2
        // Predicated region
        $region57: #{tpu_custom_call.1} parent=55 // pred_check
          %p1235 = pneg %p199
        $region58: #{tpu_custom_call.1} parent=55 // pred_check_branch
          %1237 = sbr.rel (%p1235) target = $region60
        $region59: #{tpu_custom_call.1} parent=55 // pred_region
          %s1238 = sand.u32 %s184, 1
          %s1239 = scalar_lea.sflag [#allocation4], %s1238
          %s1240 = sand.u32 %s184, 1
          %s1241 = smul.addr %s1240, 64
          %s1242 = scalar_lea.vmem [#allocation5], %s1241
          %1244 = dma.done %s1239, 1024
        $region60: #{tpu_custom_call.1} parent=55 // pred_fallthru
          _
      $region56: #{tpu_custom_call.1} parent=5 // pred_fallthru
        _
    $region6: #{tpu_custom_call.1} parent=1 // loop_footer
      %s22 = sadd.s32 1, %s18
    $region7: #{tpu_custom_call.1} parent=1 // loop_footer_branch
      %17 = sbr.rel target = $region3
    $region8: #{tpu_custom_call.1} parent=1 // loop_exit
      _
    %1245 = vsyncpa [#allocation3], 1
    %s1246 = scalar_lea.sflag [#allocation3], 1
    %1247 = vsyncpa %s1246, 1
    %1248 = vsyncpa [#allocation4], 1
    %s1249 = scalar_lea.sflag [#allocation4], 1
    %1250 = vsyncpa %s1249, 1

</llo_original>
